<compile_context>
chip_gen: v7x
topology: tpu7x:2x2x1
jax: 0.10.0
libtpu: 0.0.40
codegen_flags: <defaults>
</compile_context>

<pallas_src>
import functools
from typing import NamedTuple

import jax
import jax.numpy as jnp
from jax.experimental import pallas as pl
from jax.experimental.pallas import tpu as pltpu

_LANE = 128
_SUBLANE16 = 16           # bf16 packs 16 sublanes/vreg; also fine for f32
_MIB = 1024 * 1024
# switch MXU operands to bf16 only past this many fused-weight elements
# (below that the kernel is launch/DMA-latency bound and f32 is free + exact)
_BF16_WEIGHT_ELEMS = 1 << 20
# single-buffer the grid-invariant weight operand once it is this large
_SINGLE_BUFFER_W_BYTES = 8 * _MIB


def _round_up(x, m):
    return (x + m - 1) // m * m


# ---------------------------------------------------------------------------
# Kernel:  out = relu((input1 + input2) @ W_fused + b_fused)
# ---------------------------------------------------------------------------
def _fused_kernel(x1_ref, x2_ref, w_ref, b_ref, o_ref, *, compute_dtype):
    x = x1_ref[...] + x2_ref[...]                       # f32 VPU add (exact)
    y = jnp.dot(x.astype(compute_dtype), w_ref[...],
                preferred_element_type=jnp.float32)     # single MXU matmul
    y = y + b_ref[...]                                  # f32 bias broadcast
    o_ref[...] = jnp.maximum(y, 0.0).astype(o_ref.dtype)


# ---------------------------------------------------------------------------
# Host-side parameter fusion -- call ONCE at parameter setup, not per forward.
# ---------------------------------------------------------------------------
class FusedParams(NamedTuple):
    w: jax.Array          # (D, N) fused+padded weight, in compute dtype
    b: jax.Array          # (1, N) fused+padded bias, f32
    hidden_size: int      # H
    input_size: int       # D
    compute_dtype: jnp.dtype


def prepare_fused_params(w1, b1, w2, b2, *, compute_dtype=None):
    D, H = w1.shape
    assert w2.shape == (D, H)
    b1 = jnp.asarray(b1).reshape(1, H)
    b2 = jnp.asarray(b2).reshape(1, H)

    # pad the *concatenated* hidden dim once to a 128-lane multiple
    N = _round_up(2 * H, _LANE)
    if compute_dtype is None:
        compute_dtype = (jnp.bfloat16 if D * N >= _BF16_WEIGHT_ELEMS
                         else jnp.dtype(w1.dtype))
    w = jnp.concatenate([w1, w2], axis=1)
    w = jnp.pad(w, ((0, 0), (0, N - 2 * H))).astype(compute_dtype)
    b = jnp.concatenate([b1, b2], axis=1)
    b = jnp.pad(b, ((0, 0), (0, N - 2 * H))).astype(jnp.float32)
    return FusedParams(w=w, b=b, hidden_size=H, input_size=D,
                       compute_dtype=jnp.dtype(compute_dtype))


# ---------------------------------------------------------------------------
# Tile / VMEM sizing
# ---------------------------------------------------------------------------
def _vmem_budget_bytes():
    cap = 64 * _MIB                       # conservative default (v7x per-core)
    try:
        info = pltpu.get_tpu_info()
        cap = int(getattr(info, "vmem_capacity_bytes", cap))
    except Exception:
        pass
    return max(cap - 16 * _MIB, 16 * _MIB)   # headroom for Mosaic scratch


def _choose_tile_m(batch, cap):
    b16 = _round_up(batch, _SUBLANE16)
    if b16 <= cap:
        if b16 >= 2 * _LANE:
            # split so v7x's second TensorCore gets work (>= 2 grid steps)
            return _round_up(pl.cdiv(b16, 2), _SUBLANE16)
        return b16
    return cap                            # cap is a multiple of 16


# ---------------------------------------------------------------------------
# Forward
# ---------------------------------------------------------------------------
def fused_forward(input1, input2, params: FusedParams, *,
                  max_tile_m=256, out_dtype=None):
    B, D = input1.shape
    assert input2.shape == (B, D) and D == params.input_size
    H = params.hidden_size
    N = params.w.shape[1]
    out_dtype = input1.dtype if out_dtype is None else out_dtype

    in_isz = jnp.dtype(input1.dtype).itemsize
    w_isz = jnp.dtype(params.compute_dtype).itemsize
    out_isz = jnp.dtype(out_dtype).itemsize

    # grid-invariant weight: single-buffer once it is large enough to matter
    w_bytes = D * N * w_isz
    single_buffer_w = w_bytes > _SINGLE_BUFFER_W_BYTES
    w_bufs = 1 if single_buffer_w else 2

    def footprint(tm_):
        return (2 * 2 * tm_ * D * in_isz          # 2 inputs x double buffer
                + w_bufs * w_bytes + 2 * N * 4    # resident weights + bias
                + 2 * tm_ * N * out_isz)          # output x double buffer

    # pick tm first, shrink until it fits the chip's VMEM, then pad the batch
    # up to a multiple of tm (padded rows are sliced off below).
    budget = _vmem_budget_bytes()
    tm = _choose_tile_m(B, _round_up(max_tile_m, _SUBLANE16))
    while tm > _SUBLANE16 and footprint(tm) > budget:
        tm = _round_up(tm // 2, _SUBLANE16)
    # TODO(synk): for D*N too large for resident weights, add a K/N grid axis
    # with an f32 VMEM accumulator instead of shrinking tm further.

    Bp = _round_up(max(B, tm), tm)
    if Bp != B:
        pad = ((0, Bp - B), (0, 0))
        input1 = jnp.pad(input1, pad)
        input2 = jnp.pad(input2, pad)
    grid = (Bp // tm,)

    x_spec = pl.BlockSpec((tm, D), lambda i: (i, 0))
    if single_buffer_w:
        w_spec = pl.BlockSpec((D, N), lambda i: (0, 0),
                              pipeline_mode=pl.Buffered(1))
        b_spec = pl.BlockSpec((1, N), lambda i: (0, 0),
                              pipeline_mode=pl.Buffered(1))
    else:
        w_spec = pl.BlockSpec((D, N), lambda i: (0, 0))
        b_spec = pl.BlockSpec((1, N), lambda i: (0, 0))
    o_spec = pl.BlockSpec((tm, N), lambda i: (i, 0))

    vmem_limit = int(min(max(footprint(tm) * 5 // 4, 16 * _MIB), budget))

    out = pl.pallas_call(
        functools.partial(_fused_kernel, compute_dtype=params.compute_dtype),
        out_shape=jax.ShapeDtypeStruct((Bp, N), out_dtype),
        grid_spec=pltpu.PrefetchScalarGridSpec(
            num_scalar_prefetch=0,
            grid=grid,
            in_specs=[x_spec, x_spec, w_spec, b_spec],
            out_specs=o_spec,
        ),
        compiler_params=pltpu.CompilerParams(
            dimension_semantics=("parallel",),
            vmem_limit_bytes=vmem_limit,
        ),
    )(input1, input2, params.w, params.b)

    # split the fused lane-dense output back into the two module outputs
    out1 = out[:B, :H]
    out2 = out[:B, H:2 * H]
    return out1, out2


# ---------------------------------------------------------------------------
# PyTorch-style parameter init (nn.Linear default)
# ---------------------------------------------------------------------------
def init_linear_params(key, in_features, out_features, dtype=jnp.float32):
    kw, kb = jax.random.split(key)
    bound = 1.0 / (in_features ** 0.5)
    # stored already transposed: (in_features, out_features)
    w = jax.random.uniform(kw, (in_features, out_features), dtype,
                           minval=-bound, maxval=bound)
    b = jax.random.uniform(kb, (1, out_features), dtype,
                           minval=-bound, maxval=bound)
    return w, b


if __name__ == "__main__":
    input_size, hidden_size = 32, 32
    batch = 16

    key = jax.random.PRNGKey(0)
    k1, k2, kx1, kx2 = jax.random.split(key, 4)

    w1, b1 = init_linear_params(k1, input_size, hidden_size)
    w2, b2 = init_linear_params(k2, input_size, hidden_size)

    input1 = jax.random.normal(kx1, (batch, input_size), jnp.float32)
    input2 = jax.random.normal(kx2, (batch, input_size), jnp.float32)

    # parameter fusion happens once, outside the forward path
    params = prepare_fused_params(w1, b1, w2, b2)

    out1, out2 = fused_forward(input1, input2, params)
    jax.block_until_ready((out1, out2))
    assert out1.shape == (batch, hidden_size)
    assert out2.shape == (batch, hidden_size)

    # reference check in plain JAX (f32 operands at this size -> tight check)
    x = input1 + input2
    ref1 = jnp.maximum(x @ w1 + b1, 0.0)
    ref2 = jnp.maximum(x @ w2 + b2, 0.0)
    assert jnp.allclose(out1, ref1, atol=1e-5, rtol=1e-5), "out1 mismatch"
    assert jnp.allclose(out2, ref2, atol=1e-5, rtol=1e-5), "out2 mismatch"

    print("KERNEL_OK")
</pallas_src>

<mosaic_0001>
module attributes {stable_mosaic.version = 11 : i64} {
  func.func @_fused_kernel(%arg0: i32, %arg1: memref<16x32xf32, #tpu.memory_space<vmem>>, %arg2: memref<16x32xf32, #tpu.memory_space<vmem>>, %arg3: memref<32x128xf32, #tpu.memory_space<vmem>>, %arg4: memref<1x128xf32, #tpu.memory_space<vmem>>, %arg5: memref<16x128xf32, #tpu.memory_space<vmem>>) attributes {dimension_semantics = [#tpu.dimension_semantics<parallel>], iteration_bounds = array<i64: 1>, scalar_prefetch = 0 : i64, scratch_operands = 0 : i64, tpu.core_type = #tpu.core_type<tc>, window_params = [{transform_indices = @transform_0, window_bounds = array<i64: 16, 32>}, {transform_indices = @transform_1, window_bounds = array<i64: 16, 32>}, {pipeline_mode = #tpu.pipeline_mode<synchronous>, transform_indices = @transform_2, window_bounds = array<i64: 32, 128>}, {pipeline_mode = #tpu.pipeline_mode<synchronous>, transform_indices = @transform_3, window_bounds = array<i64: 1, 128>}, {transform_indices = @transform_4, window_bounds = array<i64: 16, 128>}]} {
    %c0 = arith.constant 0 : index
    %c0_0 = arith.constant 0 : index
    %0 = vector.load %arg1[%c0, %c0_0] : memref<16x32xf32, #tpu.memory_space<vmem>>, vector<16x32xf32>
    %c0_1 = arith.constant 0 : index
    %c0_2 = arith.constant 0 : index
    %1 = vector.load %arg2[%c0_1, %c0_2] : memref<16x32xf32, #tpu.memory_space<vmem>>, vector<16x32xf32>
    %2 = arith.addf %0, %1 : vector<16x32xf32>
    %c0_3 = arith.constant 0 : index
    %c0_4 = arith.constant 0 : index
    %3 = vector.load %arg3[%c0_3, %c0_4] : memref<32x128xf32, #tpu.memory_space<vmem>>, vector<32x128xf32>
    %cst = arith.constant dense<0.000000e+00> : vector<16x128xf32>
    %4 = tpu.matmul %2, %3, %cst {dimension_numbers = #tpu.dot_dimension_numbers<[1], [0], [0], [1], [0, 0, 1, 1], [], []>} : vector<16x32xf32>, vector<32x128xf32>, vector<16x128xf32> -> vector<16x128xf32>
    %c0_5 = arith.constant 0 : index
    %c0_6 = arith.constant 0 : index
    %5 = vector.load %arg4[%c0_5, %c0_6] : memref<1x128xf32, #tpu.memory_space<vmem>>, vector<1x128xf32>
    %6 = vector.broadcast %5 : vector<1x128xf32> to vector<16x128xf32>
    %7 = arith.addf %4, %6 : vector<16x128xf32>
    %cst_7 = arith.constant 0.000000e+00 : f32
    %8 = vector.broadcast %cst_7 : f32 to vector<16x128xf32>
    %9 = arith.maximumf %7, %8 : vector<16x128xf32>
    %c0_8 = arith.constant 0 : index
    %c0_9 = arith.constant 0 : index
    %10 = vector.load %arg5[%c0_8, %c0_9] : memref<16x128xf32, #tpu.memory_space<vmem>>, vector<16x128xf32>
    tpu.vector_store %arg5[%c0_8, %c0_9], %9 {strides = array<i32>} : memref<16x128xf32, #tpu.memory_space<vmem>>, vector<16x128xf32>,
    return
  }
  func.func @transform_0(%arg0: i32) -> (i32, i32) {
    %c0_i32 = arith.constant 0 : i32
    %c0_i32_0 = arith.constant 0 : i32
    return %arg0, %c0_i32 : i32, i32
  }
  func.func @transform_1(%arg0: i32) -> (i32, i32) {
    %c0_i32 = arith.constant 0 : i32
    %c0_i32_0 = arith.constant 0 : i32
    return %arg0, %c0_i32 : i32, i32
  }
  func.func @transform_2(%arg0: i32) -> (i32, i32) {
    %c0_i32 = arith.constant 0 : i32
    %c0_i32_0 = arith.constant 0 : i32
    %c0_i32_1 = arith.constant 0 : i32
    return %c0_i32, %c0_i32_0 : i32, i32
  }
  func.func @transform_3(%arg0: i32) -> (i32, i32) {
    %c0_i32 = arith.constant 0 : i32
    %c0_i32_0 = arith.constant 0 : i32
    %c0_i32_1 = arith.constant 0 : i32
    return %c0_i32, %c0_i32_0 : i32, i32
  }
  func.func @transform_4(%arg0: i32) -> (i32, i32) {
    %c0_i32 = arith.constant 0 : i32
    %c0_i32_0 = arith.constant 0 : i32
    return %arg0, %c0_i32 : i32, i32
  }
}

</mosaic_0001>

<llo_original>
// kernel: tpu_custom_call.1
$region0: #{tpu_custom_call.1}
  #allocation0 [shape = 'u32[]', space=smem, size = 0x4, offset = 0x4, fixed_abs, tag = 'smem constant byte address 0x4 - core index']
  #allocation1 [shape = 'u32[144,128]{1,0:T(1,128)}', space=vmem, size = 0x12000, scoped, tag = 'internal scratch']
  %s0 = inlined_call_operand.hbm [shape: f32[16,32], index: 0, kind: input, shape index: {}]
  %s1 = inlined_call_operand.hbm [shape: f32[16,32], index: 1, kind: input, shape index: {}]
  %s2 = inlined_call_operand.hbm [shape: f32[32,128], index: 2, kind: input, shape index: {}]
  %s3 = inlined_call_operand.vmem [shape: f32[1,128], index: 3, kind: input, shape index: {}]
  %s4 = inlined_call_operand.hbm [shape: f32[16,128], index: 4, kind: output, shape index: {}]
  %s5 = sld [smem:[#allocation0]]
  $region38: #{tpu_custom_call.1} parent=0
    _
  %s7 = ssub.s32 1, %s5
  %s8 = scalar_select 0, %s7, %s5
  $region1: #{tpu_custom_call.1} parent=0
    #allocation2 [shape = 'u8[8192]{0}', space=vmem, size = 0x2000, scoped, tag = 'input window, operand 0, single buffered']
    #allocation3 [shape = 's32[1]{0}', space=sflag, size = 0x4, scoped, tag = 'scoped memory for tpu_custom_call.1']
    #allocation4 [shape = 's32[1]{0}', space=sflag, size = 0x4, scoped, tag = 'scoped memory for tpu_custom_call.1']
    #allocation5 [shape = 'u8[8192]{0}', space=vmem, size = 0x2000, scoped, tag = 'input window, operand 1, single buffered']
    #allocation6 [shape = 's32[1]{0}', space=sflag, size = 0x4, scoped, tag = 'scoped memory for tpu_custom_call.1']
    #allocation7 [shape = 'u8[16384]{0}', space=vmem, size = 0x4000, scoped, tag = 'input window, operand 2, single buffered']
    #allocation8 [shape = 'u8[8192]{0}', space=vmem, size = 0x2000, scoped, tag = 'output window, operand 0, single buffered']
    %9 = vsyncpa [#allocation3], 0
    %10 = vsyncpa [#allocation6], 0
    %11 = vsyncpa [#allocation4], 0
    // Predicated region
    $region2: #{tpu_custom_call.1} parent=1 // pred_check
      _
    $region3: #{tpu_custom_call.1} parent=1 // pred_check_branch
      %13 = sbr.rel (0) target = $region5
    $region4: #{tpu_custom_call.1} parent=1 // pred_region
      %s15 = ssub.s32 256, 256
      %16 = vsyncadd [#allocation3], %s15
      %s17 = sshll.u32 [#allocation2], 4
      %s18 = int_to_ptr.vmem [resolvable:$true] %s17
      %23 = dma.hbm_to_vmem [thread:$0]  %s0, 256, %s18, [#allocation3], 128, 128, 8
    $region5: #{tpu_custom_call.1} parent=1 // pred_fallthru
      _
    // Predicated region
    $region6: #{tpu_custom_call.1} parent=1 // pred_check
      _
    $region7: #{tpu_custom_call.1} parent=1 // pred_check_branch
      %25 = sbr.rel (0) target = $region9
    $region8: #{tpu_custom_call.1} parent=1 // pred_region
      %s27 = ssub.s32 256, 256
      %28 = vsyncadd [#allocation6], %s27
      %s29 = sshll.u32 [#allocation5], 4
      %s30 = int_to_ptr.vmem [resolvable:$true] %s29
      %35 = dma.hbm_to_vmem [thread:$0]  %s1, 256, %s30, [#allocation6], 128, 128, 8
    $region9: #{tpu_custom_call.1} parent=1 // pred_fallthru
      _
    // Predicated region
    $region10: #{tpu_custom_call.1} parent=1 // pred_check
      _
    $region11: #{tpu_custom_call.1} parent=1 // pred_check_branch
      %37 = sbr.rel (0) target = $region13
    $region12: #{tpu_custom_call.1} parent=1 // pred_region
      %s39 = ssub.s32 512, 512
      %40 = vsyncadd [#allocation6], %s39
      %s41 = sshll.u32 [#allocation7], 4
      %s42 = int_to_ptr.vmem [resolvable:$true] %s41
      %47 = dma.hbm_to_vmem [thread:$0]  %s2, 512, %s42, [#allocation6], 128, 128, 8
    $region13: #{tpu_custom_call.1} parent=1 // pred_fallthru
      _
    // Predicated region
    $region14: #{tpu_custom_call.1} parent=1 // pred_check
      _
    $region15: #{tpu_custom_call.1} parent=1 // pred_check_branch
      %49 = sbr.rel (0) target = $region17
    $region16: #{tpu_custom_call.1} parent=1 // pred_region
      _
    $region17: #{tpu_custom_call.1} parent=1 // pred_fallthru
      _
    // Predicated region
    $region18: #{tpu_custom_call.1} parent=1 // pred_check
      _
    $region19: #{tpu_custom_call.1} parent=1 // pred_check_branch
      %51 = sbr.rel (0) target = $region21
    $region20: #{tpu_custom_call.1} parent=1 // pred_region
      %52 = dma.done [#allocation3], 256
    $region21: #{tpu_custom_call.1} parent=1 // pred_fallthru
      _
    // Predicated region
    $region22: #{tpu_custom_call.1} parent=1 // pred_check
      _
    $region23: #{tpu_custom_call.1} parent=1 // pred_check_branch
      %54 = sbr.rel (0) target = $region25
    $region24: #{tpu_custom_call.1} parent=1 // pred_region
      %55 = dma.done [#allocation6], 256
    $region25: #{tpu_custom_call.1} parent=1 // pred_fallthru
      _
    // Predicated region
    $region26: #{tpu_custom_call.1} parent=1 // pred_check
      _
    $region27: #{tpu_custom_call.1} parent=1 // pred_check_branch
      %57 = sbr.rel (0) target = $region29
    $region28: #{tpu_custom_call.1} parent=1 // pred_region
      %58 = dma.done [#allocation6], 512
    $region29: #{tpu_custom_call.1} parent=1 // pred_fallthru
      _
    %v59 = vld [vmem:[#allocation2] sm:$0xff]
    %v60 = vld [vmem:[#allocation2 + $0x8] sm:$0xff]
    %v61 = vld [vmem:[#allocation5] sm:$0xff]
    %v62 = vld [vmem:[#allocation5 + $0x8] sm:$0xff]
    %v63 = vadd.f32 %v59, %v61
    %v64 = vadd.f32 %v60, %v62
    %v65 = vld [vmem:[#allocation7] sm:$0xff]
    %v66 = vld [vmem:[#allocation7 + $0x8] sm:$0xff]
    %v67 = vld [vmem:[#allocation7 + $0x10] sm:$0xff]
    %v68 = vld [vmem:[#allocation7 + $0x18] sm:$0xff]
    %v69 = vld [vmem:[%s3] sm:$0x1]
    %v71 = vlaneseq
    %v72 = vshrl.u32 %v71, 7
    %v73 = vsub.s32 0, %v72
    %v74 = vrot.slane %v69, %v73
    %vm76 = vcmask 261120
    %v78 = vsel %vm76, %v63, 0
    %v81 = vsel %vm76, %v64, 0
    %83 = vmatprep.subr.mxu0 0.0
    %84 = vmatpush1.msra.mxu0 %v65
    %85 = vmatprep.subr.mxu0 0.0
    %86 = vmatpush1.msra.mxu0 %v66
    %87 = vmatprep.subr.mxu0 0.0
    %88 = vmatpush1.msra.mxu0 %v67
    %89 = vmatprep.subr.mxu0 0.0
    %90 = vmatpush1.msra.mxu0 %v68
    %91 = vmatprep.subr.mxu0 0.0
    %92 = vmatpush1.msra.mxu0 0.0
    %93 = vmatprep.subr.mxu0 0.0
    %94 = vmatpush1.msra.mxu0 0.0
    %95 = vmatprep.subr.mxu0 0.0
    %96 = vmatpush1.msra.mxu0 0.0
    %97 = vmatprep.subr.mxu0 0.0
    %98 = vmatpush1.msra.mxu0 0.0
    %99 = vmatprep.subr.mxu0 0.0
    %100 = vmatpush1.msra.mxu0 0.0
    %101 = vmatprep.subr.mxu0 0.0
    %102 = vmatpush1.msra.mxu0 0.0
    %103 = vmatprep.subr.mxu0 0.0
    %104 = vmatpush1.msra.mxu0 0.0
    %105 = vmatprep.subr.mxu0 0.0
    %106 = vmatpush1.msra.mxu0 0.0
    %107 = vmatprep.subr.mxu0 0.0
    %108 = vmatpush1.msra.mxu0 0.0
    %109 = vmatprep.subr.mxu0 0.0
    %110 = vmatpush1.msra.mxu0 0.0
    %111 = vmatprep.subr.mxu0 0.0
    %112 = vmatpush1.msra.mxu0 0.0
    %113 = vmatprep.subr.mxu0 0.0
    %114 = vmatpush1.msra.mxu0 0.0
    %115 = vmatprep.subr.mxu0 0.0
    %116 = vmatpush1.msra.mxu0 0.0
    %117 = vmatprep.subr.mxu0 0.0
    %118 = vmatpush1.msra.mxu0 0.0
    %119 = vmatprep.subr.mxu0 0.0
    %120 = vmatpush1.msra.mxu0 0.0
    %121 = vmatprep.subr.mxu0 0.0
    %122 = vmatpush1.msra.mxu0 0.0
    %123 = vmatprep.subr.mxu0 0.0
    %124 = vmatpush1.msra.mxu0 0.0
    %125 = vmatprep.subr.mxu0 0.0
    %126 = vmatpush1.msra.mxu0 0.0
    %127 = vmatprep.subr.mxu0 0.0
    %128 = vmatpush1.msra.mxu0 0.0
    %129 = vmatprep.subr.mxu0 0.0
    %130 = vmatpush1.msra.mxu0 0.0
    %131 = vmatprep.subr.mxu0 0.0
    %132 = vmatpush1.msra.mxu0 0.0
    %133 = vmatprep.subr.mxu0 0.0
    %134 = vmatpush1.msra.mxu0 0.0
    %135 = vmatprep.subr.mxu0 0.0
    %136 = vmatpush1.msra.mxu0 0.0
    %137 = vmatprep.subr.mxu0 0.0
    %138 = vmatpush1.msra.mxu0 0.0
    %139 = vmatprep.subr.mxu0 0.0
    %140 = vmatpush1.msra.mxu0 0.0
    %141 = vmatprep.subr.mxu0 0.0
    %142 = vmatpush1.msra.mxu0 0.0
    %143 = vmatprep.subr.mxu0 0.0
    %144 = vmatpush1.msra.mxu0 0.0
    %145 = vmatprep.subr.mxu0 0.0
    %146 = vmatpush1.msra.mxu0 0.0
    %147 = vmatprep.mubr.f32.mxu0 0.0
    %148 = vmatmul.mubr.f32.gmra.mrb[0].mxu0 %v78
    %v149 = vpop.f32.mrb[0].mxu0
    %v150 = vadd.f32 %v74, %v149
    %v151 = vpop.f32.mrb[0].mxu0
    %152 = vmatprep.mubr.f32.mxu0 0.0
    %153 = vmatmul.mubr.f32.gmra.mrb[0].mxu0 %v81
    %v154 = vpop.f32.mrb[0].mxu0
    %v155 = vadd.f32 %v74, %v154
    %v156 = vpop.f32.mrb[0].mxu0
    %157 = vdwg.mxu0
    %v158 = vmax.f32 %v150, 0.0
    %v159 = vmax.f32 %v155, 0.0
    %160 = vst [vmem:[#allocation8] sm:$0xff] %v158
    %161 = vst [vmem:[#allocation8 + $0x8] sm:$0xff] %v159
    // Predicated region
    $region30: #{tpu_custom_call.1} parent=1 // pred_check
      _
    $region31: #{tpu_custom_call.1} parent=1 // pred_check_branch
      %163 = sbr.rel (0) target = $region33
    $region32: #{tpu_custom_call.1} parent=1 // pred_region
      %s165 = ssub.s32 256, 256
      %166 = vsyncadd [#allocation4], %s165
      %s167 = sshll.u32 [#allocation8], 4
      %s168 = int_to_ptr.vmem [resolvable:$true] %s167
      %173 = dma.vmem_to_hbm [thread:$0]  %s168, 256, %s4, [#allocation4], 128, 128, 8
    $region33: #{tpu_custom_call.1} parent=1 // pred_fallthru
      _
    // Predicated region
    $region34: #{tpu_custom_call.1} parent=1 // pred_check
      _
    $region35: #{tpu_custom_call.1} parent=1 // pred_check_branch
      %175 = sbr.rel (0) target = $region37
    $region36: #{tpu_custom_call.1} parent=1 // pred_region
      %176 = dma.done [#allocation4], 256
    $region37: #{tpu_custom_call.1} parent=1 // pred_fallthru
      _
    %177 = vsyncpa [#allocation3], 1
    %178 = vsyncpa [#allocation6], 1
    %179 = vsyncpa [#allocation4], 1

</llo_original>
